<compile_context>
chip_gen: v7x
topology: tpu7x:2x2x1
jax: 0.10.0
libtpu: 0.0.40
codegen_flags: <defaults>
</compile_context>

<pallas_src>
import math

import jax
import jax.numpy as jnp
from jax.experimental import pallas as pl
from jax.experimental.pallas import tpu as pltpu

_PACK = 8  # rows packed per lane-row (one f32 sublane group)


def _crf_kernel(x_ref, w1_ref, b1_ref, w2_ref, b2_ref, o_ref):
    khid = w1_ref.shape[1]
    # mlp1 on the MXU: bf16 operands, f32 accumulation (cast is a free VPU op,
    # and a no-op when x is already bf16 in HBM).
    xb = x_ref[...].astype(jnp.bfloat16)
    h = jnp.dot(xb, w1_ref[...], preferred_element_type=jnp.float32)
    h = jnp.maximum(h + b1_ref[...], 0.0)
    # mlp2 on VPU + XLU: with the interleaved packing (lane j = 8*u + p) each
    # packed row's output is the sum over the lane comb {p, p+8, p+16, ...}.
    # A log tree of static cyclic lane rolls (shifts khid/2 ... 8) leaves that
    # comb sum in lanes 0..7 regardless of roll direction.
    s = h * w2_ref[...]
    step = khid // 2
    while step >= _PACK:
        s = s + pltpu.roll(s, shift=step, axis=1)
        step //= 2
    o = s[:, :_PACK] + b2_ref[0, 0]
    o_ref[...] = o.astype(o_ref.dtype)


def _round_up(a, b):
    return (a + b - 1) // b * b


def crf_forward(x, w1, b1, w2, b2, *, tile_rows=32768):
    """x: (..., in_rgbs) -> (..., 1), matching CRF.forward."""
    in_rgbs = x.shape[-1]
    hidden = w1.shape[1]
    lead = x.shape[:-1]
    n = math.prod(lead) if lead else 1

    # --- pack 8 consecutive rows per lane-row -------------------------------
    n8 = _round_up(n, _PACK)
    x2 = x.reshape(n, in_rgbs)
    if n8 != n:  # <= 7 rows of padding, only when needed (no pad-to-tile copy)
        x2 = jnp.pad(x2, ((0, n8 - n), (0, 0)))
    rows = n8 // _PACK
    kin = _PACK * in_rgbs
    xp = x2.reshape(rows, kin)  # contiguous reshape: no extra HBM traffic

    # Hidden dim padded to a power of two (>=16, so khid is a multiple of 128)
    # to keep the in-kernel lane-roll reduction a clean log tree; the padded
    # units get zero weights so they contribute nothing.
    hidden_p = max(16, pl.next_power_of_2(hidden))
    khid = _PACK * hidden_p
    w1f = jnp.asarray(w1).astype(jnp.float32)
    b1f = jnp.asarray(b1).reshape(-1).astype(jnp.float32)
    w2f = jnp.asarray(w2).reshape(-1).astype(jnp.float32)
    if hidden_p != hidden:
        w1f = jnp.pad(w1f, ((0, 0), (0, hidden_p - hidden)))
        b1f = jnp.pad(b1f, (0, hidden_p - hidden))
        w2f = jnp.pad(w2f, (0, hidden_p - hidden))

    # Block-diagonal W1 with interleaved columns (lane j = 8*u + p), bf16 MXU operand.
    w1_big = jnp.kron(jnp.eye(_PACK, dtype=jnp.float32), w1f)   # cols = hidden_p*p + u
    w1_big = (w1_big.reshape(kin, _PACK, hidden_p)
                    .transpose(0, 2, 1)
                    .reshape(kin, khid)
                    .astype(jnp.bfloat16))                      # cols = 8*u + p
    b1_big = jnp.repeat(b1f, _PACK).reshape(1, khid)            # lane 8*u+p -> b1[u]  (f32, VPU add)
    w2_big = jnp.repeat(w2f, _PACK).reshape(1, khid)            # lane 8*u+p -> w2[u]  (f32, VPU mul)
    b2_2d = jnp.asarray(b2).reshape(1, 1).astype(jnp.float32)   # scalar, lives in SMEM

    # --- row tiling ----------------------------------------------------------
    # rows_p packed rows per block.  At the default 32768 original rows the
    # f32 x tile is 2 MiB (1 MiB bf16); with double-buffered x/out plus the
    # f32 intermediates the kernel stays well under the explicit 48 MiB scoped
    # VMEM limit (v7x physical VMEM is 64 MiB; v5e/v6e default scoped limits
    # are 16/32 MiB).  Sweep tile_rows in 16384..65536 per generation.
    rows_p = max(_PACK, (tile_rows // _PACK) // _PACK * _PACK)
    rows_p = min(rows_p, rows)
    grid = (pl.cdiv(rows, rows_p),)  # partial last block: garbage rows sliced off below

    x_item = jnp.dtype(x.dtype).itemsize
    cost = pl.CostEstimate(
        # executed block-diagonal flops (not just the useful per-row flops)
        flops=2 * rows * kin * khid + 6 * rows * khid,
        transcendentals=0,
        bytes_accessed=(rows * kin * x_item          # x read
                        + rows * _PACK * x_item      # out write
                        + kin * khid * 2             # bf16 W1
                        + 2 * khid * 4 + 4),         # b1, w2, b2
    )

    out = pl.pallas_call(
        _crf_kernel,
        out_shape=jax.ShapeDtypeStruct((rows, _PACK), x.dtype),
        grid_spec=pltpu.PrefetchScalarGridSpec(
            num_scalar_prefetch=0,
            grid=grid,
            in_specs=[
                pl.BlockSpec((rows_p, kin), lambda i: (i, 0)),      # x tile (pipelined)
                pl.BlockSpec((kin, khid), lambda i: (0, 0)),        # W1 (resident)
                pl.BlockSpec((1, khid), lambda i: (0, 0)),          # b1 (resident)
                pl.BlockSpec((1, khid), lambda i: (0, 0)),          # w2 (resident)
                pl.BlockSpec(memory_space=pltpu.MemorySpace.SMEM),  # b2 scalar
            ],
            out_specs=pl.BlockSpec((rows_p, _PACK), lambda i: (i, 0)),
        ),
        compiler_params=pltpu.CompilerParams(
            # "parallel" lets v7x megacore shard row tiles across both TCs
            # (no-op on single-TC v5e/v6e).  If an xprof trace on v7x shows a
            # single active TC, switch to pltpu.CORE_PARALLEL.
            dimension_semantics=("parallel",),
            vmem_limit_bytes=48 * 1024 * 1024,
        ),
        cost_estimate=cost,
    )(xp, w1_big, b1_big, w2_big, b2_2d)

    return out.reshape(n8)[:n].reshape(*lead, 1)


def init_crf_params(key, in_rgbs, hidden, dtype=jnp.float32):
    """Deterministic synthetic parameters mirroring nn.Linear shapes.

    PyTorch nn.Linear stores weight as (out, in); we store the transpose
    (in, out) so the math is x @ W + b.
    """
    k1, k2, k3, k4 = jax.random.split(key, 4)
    bound1 = 1.0 / jnp.sqrt(in_rgbs)
    bound2 = 1.0 / jnp.sqrt(hidden)
    w1 = jax.random.uniform(k1, (in_rgbs, hidden), dtype, -bound1, bound1)
    b1 = jax.random.uniform(k2, (1, hidden), dtype, -bound1, bound1)
    w2 = jax.random.uniform(k3, (hidden, 1), dtype, -bound2, bound2)
    b2 = jax.random.uniform(k4, (1, 1), dtype, -bound2, bound2)
    return w1, b1, w2, b2


if __name__ == "__main__":
    key = jax.random.PRNGKey(0)
    in_rgbs, hidden = 16, 32
    batch, seq = 2, 8

    kx, kp = jax.random.split(key)
    x = jax.random.normal(kx, (batch, seq, in_rgbs), dtype=jnp.float32)
    w1, b1, w2, b2 = init_crf_params(kp, in_rgbs, hidden)

    out = crf_forward(x, w1, b1, w2, b2)
    out = jax.block_until_ready(out)

    # Pure-JAX f32 reference of the same math.
    ref = jnp.maximum(x @ w1 + b1.reshape(-1), 0.0) @ w2 + b2.reshape(-1)
    assert out.shape == (batch, seq, 1), out.shape
    # Layer-1 MXU operands are bf16 (f32 accumulation), so use bf16-level tolerance.
    err = float(jnp.max(jnp.abs(out - ref)))
    assert jnp.allclose(out, ref, atol=2e-2, rtol=2e-2), f"mismatch vs reference: {err}"

    print("KERNEL_OK")
</pallas_src>

<mosaic_0001>
module attributes {stable_mosaic.version = 11 : i64} {
  func.func @_crf_kernel(%arg0: i32, %arg1: memref<2x128xf32, #tpu.memory_space<vmem>>, %arg2: memref<128x256xbf16, #tpu.memory_space<vmem>>, %arg3: memref<1x256xf32, #tpu.memory_space<vmem>>, %arg4: memref<1x256xf32, #tpu.memory_space<vmem>>, %arg5: memref<1x1xf32, #tpu.memory_space<smem>>, %arg6: memref<2x8xf32, #tpu.memory_space<vmem>>) attributes {dimension_semantics = [#tpu.dimension_semantics<parallel>], iteration_bounds = array<i64: 1>, scalar_prefetch = 0 : i64, scratch_operands = 0 : i64, tpu.core_type = #tpu.core_type<tc>, window_params = [{transform_indices = @transform_0, window_bounds = array<i64: 2, 128>}, {pipeline_mode = #tpu.pipeline_mode<synchronous>, transform_indices = @transform_1, window_bounds = array<i64: 128, 256>}, {pipeline_mode = #tpu.pipeline_mode<synchronous>, transform_indices = @transform_2, window_bounds = array<i64: 1, 256>}, {pipeline_mode = #tpu.pipeline_mode<synchronous>, transform_indices = @transform_3, window_bounds = array<i64: 1, 256>}, {transform_indices = @transform_4, window_bounds = array<i64: 1, 1>}, {transform_indices = @transform_5, window_bounds = array<i64: 2, 8>}]} {
    %c0 = arith.constant 0 : index
    %c0_0 = arith.constant 0 : index
    %0 = vector.load %arg1[%c0, %c0_0] : memref<2x128xf32, #tpu.memory_space<vmem>>, vector<2x128xf32>
    %1 = arith.truncf %0 : vector<2x128xf32> to vector<2x128xbf16>
    %c0_1 = arith.constant 0 : index
    %c0_2 = arith.constant 0 : index
    %2 = vector.load %arg2[%c0_1, %c0_2] : memref<128x256xbf16, #tpu.memory_space<vmem>>, vector<128x256xbf16>
    %cst = arith.constant dense<0.000000e+00> : vector<2x256xf32>
    %3 = tpu.matmul %1, %2, %cst {dimension_numbers = #tpu.dot_dimension_numbers<[1], [0], [0], [1], [0, 0, 1, 1], [], []>} : vector<2x128xbf16>, vector<128x256xbf16>, vector<2x256xf32> -> vector<2x256xf32>
    %c0_3 = arith.constant 0 : index
    %c0_4 = arith.constant 0 : index
    %4 = vector.load %arg3[%c0_3, %c0_4] : memref<1x256xf32, #tpu.memory_space<vmem>>, vector<1x256xf32>
    %5 = vector.broadcast %4 : vector<1x256xf32> to vector<2x256xf32>
    %6 = arith.addf %3, %5 : vector<2x256xf32>
    %cst_5 = arith.constant 0.000000e+00 : f32
    %7 = vector.broadcast %cst_5 : f32 to vector<2x256xf32>
    %8 = arith.maximumf %6, %7 : vector<2x256xf32>
    %c0_6 = arith.constant 0 : index
    %c0_7 = arith.constant 0 : index
    %9 = vector.load %arg4[%c0_6, %c0_7] : memref<1x256xf32, #tpu.memory_space<vmem>>, vector<1x256xf32>
    %10 = vector.broadcast %9 : vector<1x256xf32> to vector<2x256xf32>
    %11 = arith.mulf %8, %10 : vector<2x256xf32>
    %c128_i32 = arith.constant 128 : i32
    %12 = tpu.dynamic_rotate %11 by %c128_i32 dim 1 : vector<2x256xf32>, i32 -> vector<2x256xf32>
    %13 = arith.addf %11, %12 : vector<2x256xf32>
    %c64_i32 = arith.constant 64 : i32
    %14 = tpu.dynamic_rotate %13 by %c64_i32 dim 1 : vector<2x256xf32>, i32 -> vector<2x256xf32>
    %15 = arith.addf %13, %14 : vector<2x256xf32>
    %c32_i32 = arith.constant 32 : i32
    %16 = tpu.dynamic_rotate %15 by %c32_i32 dim 1 : vector<2x256xf32>, i32 -> vector<2x256xf32>
    %17 = arith.addf %15, %16 : vector<2x256xf32>
    %c16_i32 = arith.constant 16 : i32
    %18 = tpu.dynamic_rotate %17 by %c16_i32 dim 1 : vector<2x256xf32>, i32 -> vector<2x256xf32>
    %19 = arith.addf %17, %18 : vector<2x256xf32>
    %c8_i32 = arith.constant 8 : i32
    %20 = tpu.dynamic_rotate %19 by %c8_i32 dim 1 : vector<2x256xf32>, i32 -> vector<2x256xf32>
    %21 = arith.addf %19, %20 : vector<2x256xf32>
    %22 = vector.extract_strided_slice %21 {offsets = [0, 0], sizes = [2, 8], strides = [1, 1]} : vector<2x256xf32> to vector<2x8xf32>
    %c0_8 = arith.constant 0 : index
    %c0_9 = arith.constant 0 : index
    %23 = memref.load %arg5[%c0_8, %c0_9] : memref<1x1xf32, #tpu.memory_space<smem>>
    %24 = vector.broadcast %23 : f32 to vector<2x8xf32>
    %25 = arith.addf %22, %24 : vector<2x8xf32>
    %c0_10 = arith.constant 0 : index
    %c0_11 = arith.constant 0 : index
    %26 = vector.load %arg6[%c0_10, %c0_11] : memref<2x8xf32, #tpu.memory_space<vmem>>, vector<2x8xf32>
    tpu.vector_store %arg6[%c0_10, %c0_11], %25 {strides = array<i32>} : memref<2x8xf32, #tpu.memory_space<vmem>>, vector<2x8xf32>,
    return
  }
  func.func @transform_0(%arg0: i32) -> (i32, i32) {
    %c0_i32 = arith.constant 0 : i32
    %c0_i32_0 = arith.constant 0 : i32
    return %arg0, %c0_i32 : i32, i32
  }
  func.func @transform_1(%arg0: i32) -> (i32, i32) {
    %c0_i32 = arith.constant 0 : i32
    %c0_i32_0 = arith.constant 0 : i32
    %c0_i32_1 = arith.constant 0 : i32
    return %c0_i32, %c0_i32_0 : i32, i32
  }
  func.func @transform_2(%arg0: i32) -> (i32, i32) {
    %c0_i32 = arith.constant 0 : i32
    %c0_i32_0 = arith.constant 0 : i32
    %c0_i32_1 = arith.constant 0 : i32
    return %c0_i32, %c0_i32_0 : i32, i32
  }
  func.func @transform_3(%arg0: i32) -> (i32, i32) {
    %c0_i32 = arith.constant 0 : i32
    %c0_i32_0 = arith.constant 0 : i32
    %c0_i32_1 = arith.constant 0 : i32
    return %c0_i32, %c0_i32_0 : i32, i32
  }
  func.func @transform_4(%arg0: i32) -> (i32, i32) {
    %c0_i32 = arith.constant 0 : i32
    %c0_i32_0 = arith.constant 0 : i32
    %c0_i32_1 = arith.constant 0 : i32
    return %c0_i32, %c0_i32_0 : i32, i32
  }
  func.func @transform_5(%arg0: i32) -> (i32, i32) {
    %c0_i32 = arith.constant 0 : i32
    %c0_i32_0 = arith.constant 0 : i32
    return %arg0, %c0_i32 : i32, i32
  }
}

</mosaic_0001>

<llo_original>
// kernel: tpu_custom_call.1
$region0: #{tpu_custom_call.1}
  #allocation0 [shape = 'u32[]', space=smem, size = 0x4, offset = 0x4, fixed_abs, tag = 'smem constant byte address 0x4 - core index']
  #allocation1 [shape = 'u32[144,128]{1,0:T(1,128)}', space=vmem, size = 0x12000, scoped, tag = 'internal scratch']
  #allocation2 [shape = 'f32[1,1]{1,0:T(1,128)S(6)}', space=smem, size = 0x200, scoped, tag = 'scoped memory for tpu_custom_call.1']
  %s0 = inlined_call_operand.vmem [shape: f32[2,128], index: 0, kind: input, shape index: {}]
  %s1 = inlined_call_operand.hbm [shape: bf16[128,256], index: 1, kind: input, shape index: {}]
  %s2 = inlined_call_operand.vmem [shape: f32[1,256], index: 2, kind: input, shape index: {}]
  %s3 = inlined_call_operand.vmem [shape: f32[1,256], index: 3, kind: input, shape index: {}]
  %s4 = inlined_call_operand.<no memory space> [shape: f32[1,1], index: 4, kind: input, shape index: {}]
  %s5 = inlined_call_operand.hbm [shape: f32[2,8], index: 5, kind: output, shape index: {}]
  %s6 = sld [smem:[#allocation0]]
  $region34: #{tpu_custom_call.1} parent=0
    _
  %s8 = ssub.s32 1, %s6
  %s9 = scalar_select 0, %s8, %s6
  %10 = sst [smem:[#allocation2]] %s4
  $region1: #{tpu_custom_call.1} parent=0
    #allocation3 [shape = 'u8[65536]{0}', space=vmem, size = 0x10000, scoped, tag = 'input window, operand 1, single buffered']
    #allocation4 [shape = 's32[1]{0}', space=sflag, size = 0x4, scoped, tag = 'scoped memory for tpu_custom_call.1']
    #allocation5 [shape = 's32[1]{0}', space=sflag, size = 0x4, scoped, tag = 'scoped memory for tpu_custom_call.1']
    #allocation6 [shape = 'u8[1024]{0}', space=vmem, size = 0x400, scoped, tag = 'output window, operand 0, single buffered']
    %11 = vsyncpa [#allocation4], 0
    %12 = vsyncpa [#allocation5], 0
    // Predicated region
    $region2: #{tpu_custom_call.1} parent=1 // pred_check
      _
    $region3: #{tpu_custom_call.1} parent=1 // pred_check_branch
      %14 = sbr.rel (0) target = $region5
    $region4: #{tpu_custom_call.1} parent=1 // pred_region
      _
    $region5: #{tpu_custom_call.1} parent=1 // pred_fallthru
      _
    // Predicated region
    $region6: #{tpu_custom_call.1} parent=1 // pred_check
      _
    $region7: #{tpu_custom_call.1} parent=1 // pred_check_branch
      %16 = sbr.rel (0) target = $region9
    $region8: #{tpu_custom_call.1} parent=1 // pred_region
      %s18 = ssub.s32 2048, 2048
      %19 = vsyncadd [#allocation4], %s18
      %s20 = sshll.u32 [#allocation3], 4
      %s21 = int_to_ptr.vmem [resolvable:$true] %s20
      %26 = dma.hbm_to_vmem [thread:$0]  %s1, 2048, %s21, [#allocation4], 128, 128, 8
    $region9: #{tpu_custom_call.1} parent=1 // pred_fallthru
      _
    // Predicated region
    $region10: #{tpu_custom_call.1} parent=1 // pred_check
      _
    $region11: #{tpu_custom_call.1} parent=1 // pred_check_branch
      %28 = sbr.rel (0) target = $region13
    $region12: #{tpu_custom_call.1} parent=1 // pred_region
      _
    $region13: #{tpu_custom_call.1} parent=1 // pred_fallthru
      _
    // Predicated region
    $region14: #{tpu_custom_call.1} parent=1 // pred_check
      _
    $region15: #{tpu_custom_call.1} parent=1 // pred_check_branch
      %30 = sbr.rel (0) target = $region17
    $region16: #{tpu_custom_call.1} parent=1 // pred_region
      _
    $region17: #{tpu_custom_call.1} parent=1 // pred_fallthru
      _
    // Predicated region
    $region18: #{tpu_custom_call.1} parent=1 // pred_check
      _
    $region19: #{tpu_custom_call.1} parent=1 // pred_check_branch
      %32 = sbr.rel (0) target = $region21
    $region20: #{tpu_custom_call.1} parent=1 // pred_region
      _
    $region21: #{tpu_custom_call.1} parent=1 // pred_fallthru
      _
    // Predicated region
    $region22: #{tpu_custom_call.1} parent=1 // pred_check
      _
    $region23: #{tpu_custom_call.1} parent=1 // pred_check_branch
      %34 = sbr.rel (0) target = $region25
    $region24: #{tpu_custom_call.1} parent=1 // pred_region
      %35 = dma.done [#allocation4], 2048
    $region25: #{tpu_custom_call.1} parent=1 // pred_fallthru
      _
    %v37 = vld [vmem:[%s0] sm:$0x3]
    %v38 = vpack.c.bf16 %v37, %v37
    %v39 = vld [vmem:[#allocation3] sm:$0xff]
    %v40 = vld [vmem:[#allocation3 + $0x8] sm:$0xff]
    %v41 = vld [vmem:[#allocation3 + $0x10] sm:$0xff]
    %v42 = vld [vmem:[#allocation3 + $0x18] sm:$0xff]
    %v43 = vld [vmem:[#allocation3 + $0x20] sm:$0xff]
    %v44 = vld [vmem:[#allocation3 + $0x28] sm:$0xff]
    %v45 = vld [vmem:[#allocation3 + $0x30] sm:$0xff]
    %v46 = vld [vmem:[#allocation3 + $0x38] sm:$0xff]
    %v47 = vld [vmem:[#allocation3 + $0x40] sm:$0xff]
    %v48 = vld [vmem:[#allocation3 + $0x48] sm:$0xff]
    %v49 = vld [vmem:[#allocation3 + $0x50] sm:$0xff]
    %v50 = vld [vmem:[#allocation3 + $0x58] sm:$0xff]
    %v51 = vld [vmem:[#allocation3 + $0x60] sm:$0xff]
    %v52 = vld [vmem:[#allocation3 + $0x68] sm:$0xff]
    %v53 = vld [vmem:[#allocation3 + $0x70] sm:$0xff]
    %v54 = vld [vmem:[#allocation3 + $0x78] sm:$0xff]
    %v55 = vld [vmem:[%s2] sm:$0x3]
    %v57 = vlaneseq
    %v58 = vshrl.u32 %v57, 7
    %v59 = vsub.s32 0, %v58
    %v60 = vrot.slane %v55, %v59
    %v61 = vlaneseq
    %v62 = vshrl.u32 %v61, 7
    %v63 = vsub.s32 1, %v62
    %v64 = vrot.slane %v55, %v63
    %v83 = vunpack.c.l.b16 %v39
    %v84 = vunpack.c.h.b16 %v39
    %v85 = vunpack.c.l.b16 %v40
    %v86 = vunpack.c.h.b16 %v40
    %v87 = vunpack.c.l.b16 %v41
    %v88 = vunpack.c.h.b16 %v41
    %v89 = vunpack.c.l.b16 %v42
    %v90 = vunpack.c.h.b16 %v42
    %v91 = vunpack.c.l.b16 %v43
    %v92 = vunpack.c.h.b16 %v43
    %v93 = vunpack.c.l.b16 %v44
    %v94 = vunpack.c.h.b16 %v44
    %v95 = vunpack.c.l.b16 %v45
    %v96 = vunpack.c.h.b16 %v45
    %v97 = vunpack.c.l.b16 %v46
    %v98 = vunpack.c.h.b16 %v46
    %v99 = vunpack.c.l.b16 %v47
    %v100 = vunpack.c.h.b16 %v47
    %v101 = vunpack.c.l.b16 %v48
    %v102 = vunpack.c.h.b16 %v48
    %v103 = vunpack.c.l.b16 %v49
    %v104 = vunpack.c.h.b16 %v49
    %v105 = vunpack.c.l.b16 %v50
    %v106 = vunpack.c.h.b16 %v50
    %v107 = vunpack.c.l.b16 %v51
    %v108 = vunpack.c.h.b16 %v51
    %v109 = vunpack.c.l.b16 %v52
    %v110 = vunpack.c.h.b16 %v52
    %v111 = vunpack.c.l.b16 %v53
    %v112 = vunpack.c.h.b16 %v53
    %v113 = vunpack.c.l.b16 %v54
    %v114 = vunpack.c.h.b16 %v54
    %v115 = vpack.c.b16 %v85, %v83
    %v116 = vpack.c.b16 %v86, %v84
    %v117 = vpack.c.b16 %v89, %v87
    %v118 = vpack.c.b16 %v90, %v88
    %v119 = vpack.c.b16 %v93, %v91
    %v120 = vpack.c.b16 %v94, %v92
    %v121 = vpack.c.b16 %v97, %v95
    %v122 = vpack.c.b16 %v98, %v96
    %v123 = vpack.c.b16 %v101, %v99
    %v124 = vpack.c.b16 %v102, %v100
    %v125 = vpack.c.b16 %v105, %v103
    %v126 = vpack.c.b16 %v106, %v104
    %v127 = vpack.c.b16 %v109, %v107
    %v128 = vpack.c.b16 %v110, %v108
    %v129 = vpack.c.b16 %v113, %v111
    %v130 = vpack.c.b16 %v114, %v112
    %147 = vmatprep.subr.bf16.mxu0 %v116
    %148 = vmatpush1.bf16.msra.mxu0 %v115
    %149 = vmatprep.subr.bf16.mxu0 %v118
    %150 = vmatpush1.bf16.msra.mxu0 %v117
    %151 = vmatprep.subr.bf16.mxu0 %v120
    %152 = vmatpush1.bf16.msra.mxu0 %v119
    %153 = vmatprep.subr.bf16.mxu0 %v122
    %154 = vmatpush1.bf16.msra.mxu0 %v121
    %155 = vmatprep.subr.bf16.mxu0 %v124
    %156 = vmatpush1.bf16.msra.mxu0 %v123
    %157 = vmatprep.subr.bf16.mxu0 %v126
    %158 = vmatpush1.bf16.msra.mxu0 %v125
    %159 = vmatprep.subr.bf16.mxu0 %v128
    %160 = vmatpush1.bf16.msra.mxu0 %v127
    %161 = vmatprep.subr.bf16.mxu0 %v130
    %162 = vmatpush1.bf16.msra.mxu0 %v129
    %163 = vmatprep.subr.bf16.mxu0 0
    %164 = vmatpush1.bf16.msra.mxu0 0
    %165 = vmatprep.subr.bf16.mxu0 0
    %166 = vmatpush1.bf16.msra.mxu0 0
    %167 = vmatprep.subr.bf16.mxu0 0
    %168 = vmatpush1.bf16.msra.mxu0 0
    %169 = vmatprep.subr.bf16.mxu0 0
    %170 = vmatpush1.bf16.msra.mxu0 0
    %171 = vmatprep.subr.bf16.mxu0 0
    %172 = vmatpush1.bf16.msra.mxu0 0
    %173 = vmatprep.subr.bf16.mxu0 0
    %174 = vmatpush1.bf16.msra.mxu0 0
    %175 = vmatprep.subr.bf16.mxu0 0
    %176 = vmatpush1.bf16.msra.mxu0 0
    %177 = vmatprep.subr.bf16.mxu0 0
    %178 = vmatpush1.bf16.msra.mxu0 0
    %179 = vmatprep.mubr.bf16.mxu0 0
    %180 = vmatmul.mubr.bf16.gmra.mrb[0].mxu0 %v38
    %v181 = vpop.f32.mrb[0].mxu0
    %v182 = vadd.f32 %v60, %v181
    %v183 = vpop.f32.mrb[0].mxu0
    %v184 = vadd.f32 %v64, %v183
    %v185 = vpop.f32.mrb[0].mxu0
    %v186 = vpop.f32.mrb[0].mxu0
    %187 = vdwg.mxu0
    %v188 = vmax.f32 %v182, 0.0
    %v189 = vmax.f32 %v184, 0.0
    %v190 = vld [vmem:[%s3] sm:$0x3]
    %v192 = vlaneseq
    %v193 = vshrl.u32 %v192, 7
    %v194 = vsub.s32 0, %v193
    %v195 = vrot.slane %v190, %v194
    %v196 = vlaneseq
    %v197 = vshrl.u32 %v196, 7
    %v198 = vsub.s32 1, %v197
    %v199 = vrot.slane %v190, %v198
    %v202 = vmul.f32 %v188, %v195
    %v203 = vmul.f32 %v189, %v199
    %v204 = vadd.f32 %v202, %v203
    %205 = vrot.lane.b32.xlu0 %v204, 64
    %v206 = vpop.permute.xlu0 %205
    %v207 = vlaneseq
    %v208 = vand.u32 %v207, 127
    %v209 = vadd.f32 %v204, %v206
    %210 = vrot.lane.b32.xlu0 %v209, 32
    %v211 = vpop.permute.xlu0 %210
    %v212 = vadd.f32 %v209, %v211
    %213 = vrot.lane.b32.xlu0 %v212, 16
    %v214 = vpop.permute.xlu0 %213
    %v215 = vadd.f32 %v212, %v214
    %216 = vrot.lane.b32.xlu0 %v215, 8
    %v217 = vpop.permute.xlu0 %216
    %v218 = vadd.f32 %v215, %v217
    %s219 = sld [smem:[#allocation2]]
    %v220 = vstv %s219
    %v221 = vadd.f32 %v218, %v220
    %vm222 = vcmask 58368
    %223 = vst.msk [vmem:[#allocation6] sm:$0x3] %vm222, %v221
    // Predicated region
    $region26: #{tpu_custom_call.1} parent=1 // pred_check
      _
    $region27: #{tpu_custom_call.1} parent=1 // pred_check_branch
      %225 = sbr.rel (0) target = $region29
    $region28: #{tpu_custom_call.1} parent=1 // pred_region
      %s227 = ssub.s32 32, 32
      %228 = vsyncadd [#allocation5], %s227
      %s230 = sshll.u32 [#allocation6], 4
      %s231 = int_to_ptr.vmem [resolvable:$true] %s230
      %233 = dma.vmem_to_hbm [thread:$0]  %s231, 32, %s5, [#allocation5]
    $region29: #{tpu_custom_call.1} parent=1 // pred_fallthru
      _
    // Predicated region
    $region30: #{tpu_custom_call.1} parent=1 // pred_check
      _
    $region31: #{tpu_custom_call.1} parent=1 // pred_check_branch
      %235 = sbr.rel (0) target = $region33
    $region32: #{tpu_custom_call.1} parent=1 // pred_region
      %236 = dma.done [#allocation5], 32
    $region33: #{tpu_custom_call.1} parent=1 // pred_fallthru
      _
    %237 = vsyncpa [#allocation4], 1
    %238 = vsyncpa [#allocation5], 1

</llo_original>
